<compile_context>
chip_gen: v7x
topology: tpu7x:2x2x1
jax: 0.10.0
libtpu: 0.0.40
codegen_flags: <defaults>
</compile_context>

<pallas_src>
import functools

import jax
import jax.numpy as jnp
from jax.experimental import pallas as pl
from jax.experimental.pallas import tpu as pltpu

BN_EPS = 1e-5
HIDDEN_DIMS = (512, 256, 128, 64)


def _round_up(n, m):
    return (n + m - 1) // m * m


def _generator_fused_kernel(num_blocks, x_ref, *refs):
    """One grid point = one BN group of rows.

    refs layout: [w_0 .. w_{L-1}, w_final, smalls, out]
    smalls rows: [gamma_0, beta_0, gamma_1, beta_1, ..., b_final]  (lane-padded f32)
    """
    w_refs = refs[:num_blocks]
    wf_ref = refs[num_blocks]
    smalls_ref = refs[num_blocks + 1]
    o_ref = refs[num_blocks + 2]

    x = x_ref[...]                      # (B, z_dim) f32
    inv_b = 1.0 / x.shape[0]            # static

    def mxu_dot(a, w):
        if w.dtype != a.dtype:          # weights pre-packed as bf16 -> bf16 MXU operands
            a = a.astype(w.dtype)
        return jnp.dot(a, w, preferred_element_type=jnp.float32)

    # TODO(synk): on v5e, overlap the W2..Wf weight DMA with layer-1/2 compute via
    # memory_space=pl.ANY + pltpu.make_async_copy double-buffering; skipped here since on
    # v6e/v7x the whole ~770 KB weight fetch is well under half a microsecond.
    for i in range(num_blocks):         # traced once; unrolls into straight-line code
        w = w_refs[i][...]
        dout = w.shape[1]

        # Linear (pre-BN bias omitted: training-mode BN subtracts the per-feature batch
        # mean immediately after, so the bias cancels exactly).
        y = mxu_dot(x, w)                                           # (B, dout) f32

        # BatchNorm1d (training mode, biased variance), single-sweep stats folded to one
        # scale/shift affine.
        mean = jnp.sum(y, axis=0, keepdims=True) * inv_b            # (1, dout)
        mean_sq = jnp.sum(y * y, axis=0, keepdims=True) * inv_b     # (1, dout)
        var = mean_sq - mean * mean
        gamma = smalls_ref[2 * i:2 * i + 1, :dout]                  # static slices: free
        beta = smalls_ref[2 * i + 1:2 * i + 2, :dout]
        scale = gamma * jax.lax.rsqrt(var + BN_EPS)                 # EUP
        shift = beta - mean * scale

        # Affine + ReLU.
        x = jnp.maximum(y * scale + shift, 0.0)

    # Final Linear (with bias) + Tanh; output columns are lane-padded to a multiple of 128
    # (padding columns of w_final/b_final are zero -> tanh(0)=0, sliced off in the wrapper).
    wf = wf_ref[...]
    n_pad = wf.shape[1]
    b_final = smalls_ref[2 * num_blocks:2 * num_blocks + 1, :n_pad]
    o_ref[...] = jnp.tanh(mxu_dot(x, wf) + b_final)


def _generator_pallas(noise, weights, w_final, smalls, group_size):
    total_b, z_dim = noise.shape
    n_pad = w_final.shape[1]
    num_groups = total_b // group_size
    num_blocks = len(weights)

    in_specs = [pl.BlockSpec((group_size, z_dim), lambda g: (g, 0))]
    for w in weights:
        # Constant index_map -> weights stay resident in VMEM across all grid iterations.
        in_specs.append(pl.BlockSpec(w.shape, lambda g: (0, 0)))
    in_specs.append(pl.BlockSpec(w_final.shape, lambda g: (0, 0)))
    in_specs.append(pl.BlockSpec(smalls.shape, lambda g: (0, 0)))

    return pl.pallas_call(
        functools.partial(_generator_fused_kernel, num_blocks),
        out_shape=jax.ShapeDtypeStruct((total_b, n_pad), jnp.float32),
        grid=(num_groups,),
        in_specs=in_specs,
        out_specs=pl.BlockSpec((group_size, n_pad), lambda g: (g, 0)),
        compiler_params=pltpu.CompilerParams(dimension_semantics=("parallel",)),
    )(noise, *weights, w_final, smalls)


def pack_generator_params(params, im_dim, use_bf16_matmul=False):
    """One-time packing: optional bf16 weight storage, lane-padded final layer, and all
    (1, dout) gamma/beta/b_final vectors stacked into a single f32 array."""
    blocks = params["blocks"]
    w_final, b_final = params["final"]
    num_blocks = len(blocks)
    n_pad = _round_up(im_dim, 128)
    w_dtype = jnp.bfloat16 if use_bf16_matmul else jnp.float32

    weights = tuple(w.astype(w_dtype) for (w, _b, _g, _bt) in blocks)

    wf = jnp.zeros((w_final.shape[0], n_pad), jnp.float32).at[:, :im_dim].set(w_final)
    wf = wf.astype(w_dtype)

    width = max(max(g.shape[-1] for (_w, _b, g, _bt) in blocks), n_pad)
    smalls = jnp.zeros((2 * num_blocks + 1, width), jnp.float32)
    for i, (_w, _b, gamma, beta) in enumerate(blocks):
        d = gamma.shape[-1]
        smalls = smalls.at[2 * i, :d].set(gamma.reshape(-1))
        smalls = smalls.at[2 * i + 1, :d].set(beta.reshape(-1))
    smalls = smalls.at[2 * num_blocks, :im_dim].set(b_final.reshape(-1))

    return {"weights": weights, "w_final": wf, "smalls": smalls}


@functools.partial(jax.jit, static_argnames=("im_dim", "group_size"))
def generator_forward(packed, noise, im_dim, group_size=None):
    """noise: (G*group_size, z_dim). BN stats are computed per group of `group_size` rows
    (group_size=None -> one group = the whole batch, matching one PyTorch forward call)."""
    total_b = noise.shape[0]
    if group_size is None:
        group_size = total_b
    assert total_b % group_size == 0, "batch must be a multiple of group_size"
    out = _generator_pallas(noise, packed["weights"], packed["w_final"],
                            packed["smalls"], group_size)
    return out[:, :im_dim]


def init_generator_params(key, z_dim, im_dim):
    """Mirrors PyTorch defaults: Linear U(-1/sqrt(fan_in), +), BN gamma=1 beta=0."""
    dims = [z_dim, *HIDDEN_DIMS]
    params = {"blocks": [], "final": None}
    for i in range(len(dims) - 1):
        din, dout = dims[i], dims[i + 1]
        key, kw, kb = jax.random.split(key, 3)
        bound = 1.0 / jnp.sqrt(din)
        w = jax.random.uniform(kw, (din, dout), jnp.float32, -bound, bound)
        b = jax.random.uniform(kb, (1, dout), jnp.float32, -bound, bound)
        gamma = jnp.ones((1, dout), jnp.float32)
        beta = jnp.zeros((1, dout), jnp.float32)
        params["blocks"].append((w, b, gamma, beta))
    din, dout = dims[-1], im_dim
    key, kw, kb = jax.random.split(key, 3)
    bound = 1.0 / jnp.sqrt(din)
    w = jax.random.uniform(kw, (din, dout), jnp.float32, -bound, bound)
    b = jax.random.uniform(kb, (1, dout), jnp.float32, -bound, bound)
    params["final"] = (w, b)
    return params


def generator_reference(params, noise):
    """Pure-JAX reference with the FULL PyTorch math (pre-BN bias, two-pass variance)."""
    x = noise
    for (w, b, gamma, beta) in params["blocks"]:
        y = x @ w + b
        mean = jnp.mean(y, axis=0, keepdims=True)
        var = jnp.mean((y - mean) ** 2, axis=0, keepdims=True)
        y = (y - mean) / jnp.sqrt(var + BN_EPS) * gamma + beta
        x = jnp.maximum(y, 0.0)
    w, b = params["final"]
    return jnp.tanh(x @ w + b)


if __name__ == "__main__":
    z_dim, im_dim, batch = 32, 64, 8

    key = jax.random.PRNGKey(0)
    kp, kn = jax.random.split(key)
    params = init_generator_params(kp, z_dim, im_dim)
    noise = jax.random.normal(kn, (batch, z_dim), jnp.float32)

    ref = generator_reference(params, noise)

    # f32-weight path: must match the PyTorch/f32 reference tightly.
    packed_f32 = pack_generator_params(params, im_dim, use_bf16_matmul=False)
    out = jax.block_until_ready(generator_forward(packed_f32, noise, im_dim))
    assert out.shape == (batch, im_dim)
    assert jnp.allclose(out, ref, atol=5e-4, rtol=5e-4), "f32 kernel mismatch vs reference"

    # bf16-weight (bf16 MXU operand) path: looser tolerance (bf16 mantissa).
    packed_bf16 = pack_generator_params(params, im_dim, use_bf16_matmul=True)
    out_bf16 = jax.block_until_ready(generator_forward(packed_bf16, noise, im_dim))
    assert jnp.allclose(out_bf16, ref, atol=5e-2, rtol=5e-2), "bf16 kernel mismatch vs reference"

    # Amortized multi-group call: 4 logical batches of 8 rows in ONE pallas_call
    # (per-group BN stats; weights DMA'd once, "parallel" axis for megacore).
    G = 4
    noise_big = jax.random.normal(jax.random.PRNGKey(1), (G * batch, z_dim), jnp.float32)
    out_big = jax.block_until_ready(
        generator_forward(packed_f32, noise_big, im_dim, group_size=batch))
    ref_big = jnp.concatenate(
        [generator_reference(params, noise_big[g * batch:(g + 1) * batch]) for g in range(G)],
        axis=0)
    assert out_big.shape == (G * batch, im_dim)
    assert jnp.allclose(out_big, ref_big, atol=5e-4, rtol=5e-4), "grouped kernel mismatch"

    print("KERNEL_OK")
</pallas_src>

<mosaic_0001>
module attributes {stable_mosaic.version = 11 : i64} {
  func.func @_generator_fused_kernel(%arg0: i32, %arg1: memref<8x32xf32, #tpu.memory_space<vmem>>, %arg2: memref<32x512xf32, #tpu.memory_space<vmem>>, %arg3: memref<512x256xf32, #tpu.memory_space<vmem>>, %arg4: memref<256x128xf32, #tpu.memory_space<vmem>>, %arg5: memref<128x64xf32, #tpu.memory_space<vmem>>, %arg6: memref<64x128xf32, #tpu.memory_space<vmem>>, %arg7: memref<9x512xf32, #tpu.memory_space<vmem>>, %arg8: memref<8x128xf32, #tpu.memory_space<vmem>>) attributes {dimension_semantics = [#tpu.dimension_semantics<parallel>], iteration_bounds = array<i64: 1>, scalar_prefetch = 0 : i64, scratch_operands = 0 : i64, tpu.core_type = #tpu.core_type<tc>, window_params = [{transform_indices = @transform_0, window_bounds = array<i64: 8, 32>}, {pipeline_mode = #tpu.pipeline_mode<synchronous>, transform_indices = @transform_1, window_bounds = array<i64: 32, 512>}, {pipeline_mode = #tpu.pipeline_mode<synchronous>, transform_indices = @transform_2, window_bounds = array<i64: 512, 256>}, {pipeline_mode = #tpu.pipeline_mode<synchronous>, transform_indices = @transform_3, window_bounds = array<i64: 256, 128>}, {pipeline_mode = #tpu.pipeline_mode<synchronous>, transform_indices = @transform_4, window_bounds = array<i64: 128, 64>}, {pipeline_mode = #tpu.pipeline_mode<synchronous>, transform_indices = @transform_5, window_bounds = array<i64: 64, 128>}, {pipeline_mode = #tpu.pipeline_mode<synchronous>, transform_indices = @transform_6, window_bounds = array<i64: 9, 512>}, {transform_indices = @transform_7, window_bounds = array<i64: 8, 128>}]} {
    %c0 = arith.constant 0 : index
    %c0_0 = arith.constant 0 : index
    %0 = vector.load %arg1[%c0, %c0_0] : memref<8x32xf32, #tpu.memory_space<vmem>>, vector<8x32xf32>
    %c0_1 = arith.constant 0 : index
    %c0_2 = arith.constant 0 : index
    %1 = vector.load %arg2[%c0_1, %c0_2] : memref<32x512xf32, #tpu.memory_space<vmem>>, vector<32x512xf32>
    %cst = arith.constant dense<0.000000e+00> : vector<8x512xf32>
    %2 = tpu.matmul %0, %1, %cst {dimension_numbers = #tpu.dot_dimension_numbers<[1], [0], [0], [1], [0, 0, 1, 1], [], []>} : vector<8x32xf32>, vector<32x512xf32>, vector<8x512xf32> -> vector<8x512xf32>
    %cst_3 = arith.constant dense<0.000000e+00> : vector<512xf32>
    %3 = vector.multi_reduction <add>, %2, %cst_3 [0] : vector<8x512xf32> to vector<512xf32>
    %4 = vector.shape_cast %3 : vector<512xf32> to vector<1x512xf32>
    %cst_4 = arith.constant 1.250000e-01 : f32
    %5 = vector.broadcast %cst_4 : f32 to vector<1x512xf32>
    %6 = arith.mulf %4, %5 : vector<1x512xf32>
    %7 = arith.mulf %2, %2 : vector<8x512xf32>
    %cst_5 = arith.constant dense<0.000000e+00> : vector<512xf32>
    %8 = vector.multi_reduction <add>, %7, %cst_5 [0] : vector<8x512xf32> to vector<512xf32>
    %9 = vector.shape_cast %8 : vector<512xf32> to vector<1x512xf32>
    %cst_6 = arith.constant 1.250000e-01 : f32
    %10 = vector.broadcast %cst_6 : f32 to vector<1x512xf32>
    %11 = arith.mulf %9, %10 : vector<1x512xf32>
    %12 = arith.mulf %6, %6 : vector<1x512xf32>
    %13 = arith.subf %11, %12 : vector<1x512xf32>
    %c0_7 = arith.constant 0 : index
    %c0_8 = arith.constant 0 : index
    %14 = vector.load %arg7[%c0_7, %c0_8] : memref<9x512xf32, #tpu.memory_space<vmem>>, vector<1x512xf32>
    %c1 = arith.constant 1 : index
    %c0_9 = arith.constant 0 : index
    %15 = vector.load %arg7[%c1, %c0_9] : memref<9x512xf32, #tpu.memory_space<vmem>>, vector<1x512xf32>
    %cst_10 = arith.constant 9.99999974E-6 : f32
    %16 = vector.broadcast %cst_10 : f32 to vector<1x512xf32>
    %17 = arith.addf %13, %16 : vector<1x512xf32>
    %18 = math.rsqrt %17 : vector<1x512xf32>
    %19 = arith.mulf %14, %18 : vector<1x512xf32>
    %20 = arith.mulf %6, %19 : vector<1x512xf32>
    %21 = arith.subf %15, %20 : vector<1x512xf32>
    %22 = vector.broadcast %19 : vector<1x512xf32> to vector<8x512xf32>
    %23 = arith.mulf %2, %22 : vector<8x512xf32>
    %24 = vector.broadcast %21 : vector<1x512xf32> to vector<8x512xf32>
    %25 = arith.addf %23, %24 : vector<8x512xf32>
    %cst_11 = arith.constant 0.000000e+00 : f32
    %26 = vector.broadcast %cst_11 : f32 to vector<8x512xf32>
    %27 = arith.maximumf %25, %26 : vector<8x512xf32>
    %c0_12 = arith.constant 0 : index
    %c0_13 = arith.constant 0 : index
    %28 = vector.load %arg3[%c0_12, %c0_13] : memref<512x256xf32, #tpu.memory_space<vmem>>, vector<512x256xf32>
    %cst_14 = arith.constant dense<0.000000e+00> : vector<8x256xf32>
    %29 = tpu.matmul %27, %28, %cst_14 {dimension_numbers = #tpu.dot_dimension_numbers<[1], [0], [0], [1], [0, 0, 1, 1], [], []>} : vector<8x512xf32>, vector<512x256xf32>, vector<8x256xf32> -> vector<8x256xf32>
    %cst_15 = arith.constant dense<0.000000e+00> : vector<256xf32>
    %30 = vector.multi_reduction <add>, %29, %cst_15 [0] : vector<8x256xf32> to vector<256xf32>
    %31 = vector.shape_cast %30 : vector<256xf32> to vector<1x256xf32>
    %cst_16 = arith.constant 1.250000e-01 : f32
    %32 = vector.broadcast %cst_16 : f32 to vector<1x256xf32>
    %33 = arith.mulf %31, %32 : vector<1x256xf32>
    %34 = arith.mulf %29, %29 : vector<8x256xf32>
    %cst_17 = arith.constant dense<0.000000e+00> : vector<256xf32>
    %35 = vector.multi_reduction <add>, %34, %cst_17 [0] : vector<8x256xf32> to vector<256xf32>
    %36 = vector.shape_cast %35 : vector<256xf32> to vector<1x256xf32>
    %cst_18 = arith.constant 1.250000e-01 : f32
    %37 = vector.broadcast %cst_18 : f32 to vector<1x256xf32>
    %38 = arith.mulf %36, %37 : vector<1x256xf32>
    %39 = arith.mulf %33, %33 : vector<1x256xf32>
    %40 = arith.subf %38, %39 : vector<1x256xf32>
    %c2 = arith.constant 2 : index
    %c0_19 = arith.constant 0 : index
    %41 = vector.load %arg7[%c2, %c0_19] : memref<9x512xf32, #tpu.memory_space<vmem>>, vector<1x256xf32>
    %c3 = arith.constant 3 : index
    %c0_20 = arith.constant 0 : index
    %42 = vector.load %arg7[%c3, %c0_20] : memref<9x512xf32, #tpu.memory_space<vmem>>, vector<1x256xf32>
    %cst_21 = arith.constant 9.99999974E-6 : f32
    %43 = vector.broadcast %cst_21 : f32 to vector<1x256xf32>
    %44 = arith.addf %40, %43 : vector<1x256xf32>
    %45 = math.rsqrt %44 : vector<1x256xf32>
    %46 = arith.mulf %41, %45 : vector<1x256xf32>
    %47 = arith.mulf %33, %46 : vector<1x256xf32>
    %48 = arith.subf %42, %47 : vector<1x256xf32>
    %49 = vector.broadcast %46 : vector<1x256xf32> to vector<8x256xf32>
    %50 = arith.mulf %29, %49 : vector<8x256xf32>
    %51 = vector.broadcast %48 : vector<1x256xf32> to vector<8x256xf32>
    %52 = arith.addf %50, %51 : vector<8x256xf32>
    %cst_22 = arith.constant 0.000000e+00 : f32
    %53 = vector.broadcast %cst_22 : f32 to vector<8x256xf32>
    %54 = arith.maximumf %52, %53 : vector<8x256xf32>
    %c0_23 = arith.constant 0 : index
    %c0_24 = arith.constant 0 : index
    %55 = vector.load %arg4[%c0_23, %c0_24] : memref<256x128xf32, #tpu.memory_space<vmem>>, vector<256x128xf32>
    %cst_25 = arith.constant dense<0.000000e+00> : vector<8x128xf32>
    %56 = tpu.matmul %54, %55, %cst_25 {dimension_numbers = #tpu.dot_dimension_numbers<[1], [0], [0], [1], [0, 0, 1, 1], [], []>} : vector<8x256xf32>, vector<256x128xf32>, vector<8x128xf32> -> vector<8x128xf32>
    %cst_26 = arith.constant dense<0.000000e+00> : vector<128xf32>
    %57 = vector.multi_reduction <add>, %56, %cst_26 [0] : vector<8x128xf32> to vector<128xf32>
    %58 = vector.shape_cast %57 : vector<128xf32> to vector<1x128xf32>
    %cst_27 = arith.constant 1.250000e-01 : f32
    %59 = vector.broadcast %cst_27 : f32 to vector<1x128xf32>
    %60 = arith.mulf %58, %59 : vector<1x128xf32>
    %61 = arith.mulf %56, %56 : vector<8x128xf32>
    %cst_28 = arith.constant dense<0.000000e+00> : vector<128xf32>
    %62 = vector.multi_reduction <add>, %61, %cst_28 [0] : vector<8x128xf32> to vector<128xf32>
    %63 = vector.shape_cast %62 : vector<128xf32> to vector<1x128xf32>
    %cst_29 = arith.constant 1.250000e-01 : f32
    %64 = vector.broadcast %cst_29 : f32 to vector<1x128xf32>
    %65 = arith.mulf %63, %64 : vector<1x128xf32>
    %66 = arith.mulf %60, %60 : vector<1x128xf32>
    %67 = arith.subf %65, %66 : vector<1x128xf32>
    %c4 = arith.constant 4 : index
    %c0_30 = arith.constant 0 : index
    %68 = vector.load %arg7[%c4, %c0_30] : memref<9x512xf32, #tpu.memory_space<vmem>>, vector<1x128xf32>
    %c5 = arith.constant 5 : index
    %c0_31 = arith.constant 0 : index
    %69 = vector.load %arg7[%c5, %c0_31] : memref<9x512xf32, #tpu.memory_space<vmem>>, vector<1x128xf32>
    %cst_32 = arith.constant 9.99999974E-6 : f32
    %70 = vector.broadcast %cst_32 : f32 to vector<1x128xf32>
    %71 = arith.addf %67, %70 : vector<1x128xf32>
    %72 = math.rsqrt %71 : vector<1x128xf32>
    %73 = arith.mulf %68, %72 : vector<1x128xf32>
    %74 = arith.mulf %60, %73 : vector<1x128xf32>
    %75 = arith.subf %69, %74 : vector<1x128xf32>
    %76 = vector.broadcast %73 : vector<1x128xf32> to vector<8x128xf32>
    %77 = arith.mulf %56, %76 : vector<8x128xf32>
    %78 = vector.broadcast %75 : vector<1x128xf32> to vector<8x128xf32>
    %79 = arith.addf %77, %78 : vector<8x128xf32>
    %cst_33 = arith.constant 0.000000e+00 : f32
    %80 = vector.broadcast %cst_33 : f32 to vector<8x128xf32>
    %81 = arith.maximumf %79, %80 : vector<8x128xf32>
    %c0_34 = arith.constant 0 : index
    %c0_35 = arith.constant 0 : index
    %82 = vector.load %arg5[%c0_34, %c0_35] : memref<128x64xf32, #tpu.memory_space<vmem>>, vector<128x64xf32>
    %cst_36 = arith.constant dense<0.000000e+00> : vector<8x64xf32>
    %83 = tpu.matmul %81, %82, %cst_36 {dimension_numbers = #tpu.dot_dimension_numbers<[1], [0], [0], [1], [0, 0, 1, 1], [], []>} : vector<8x128xf32>, vector<128x64xf32>, vector<8x64xf32> -> vector<8x64xf32>
    %cst_37 = arith.constant dense<0.000000e+00> : vector<64xf32>
    %84 = vector.multi_reduction <add>, %83, %cst_37 [0] : vector<8x64xf32> to vector<64xf32>
    %85 = vector.shape_cast %84 : vector<64xf32> to vector<1x64xf32>
    %cst_38 = arith.constant 1.250000e-01 : f32
    %86 = vector.broadcast %cst_38 : f32 to vector<1x64xf32>
    %87 = arith.mulf %85, %86 : vector<1x64xf32>
    %88 = arith.mulf %83, %83 : vector<8x64xf32>
    %cst_39 = arith.constant dense<0.000000e+00> : vector<64xf32>
    %89 = vector.multi_reduction <add>, %88, %cst_39 [0] : vector<8x64xf32> to vector<64xf32>
    %90 = vector.shape_cast %89 : vector<64xf32> to vector<1x64xf32>
    %cst_40 = arith.constant 1.250000e-01 : f32
    %91 = vector.broadcast %cst_40 : f32 to vector<1x64xf32>
    %92 = arith.mulf %90, %91 : vector<1x64xf32>
    %93 = arith.mulf %87, %87 : vector<1x64xf32>
    %94 = arith.subf %92, %93 : vector<1x64xf32>
    %c6 = arith.constant 6 : index
    %c0_41 = arith.constant 0 : index
    %95 = vector.load %arg7[%c6, %c0_41] : memref<9x512xf32, #tpu.memory_space<vmem>>, vector<1x64xf32>
    %c7 = arith.constant 7 : index
    %c0_42 = arith.constant 0 : index
    %96 = vector.load %arg7[%c7, %c0_42] : memref<9x512xf32, #tpu.memory_space<vmem>>, vector<1x64xf32>
    %cst_43 = arith.constant 9.99999974E-6 : f32
    %97 = vector.broadcast %cst_43 : f32 to vector<1x64xf32>
    %98 = arith.addf %94, %97 : vector<1x64xf32>
    %99 = math.rsqrt %98 : vector<1x64xf32>
    %100 = arith.mulf %95, %99 : vector<1x64xf32>
    %101 = arith.mulf %87, %100 : vector<1x64xf32>
    %102 = arith.subf %96, %101 : vector<1x64xf32>
    %103 = vector.broadcast %100 : vector<1x64xf32> to vector<8x64xf32>
    %104 = arith.mulf %83, %103 : vector<8x64xf32>
    %105 = vector.broadcast %102 : vector<1x64xf32> to vector<8x64xf32>
    %106 = arith.addf %104, %105 : vector<8x64xf32>
    %cst_44 = arith.constant 0.000000e+00 : f32
    %107 = vector.broadcast %cst_44 : f32 to vector<8x64xf32>
    %108 = arith.maximumf %106, %107 : vector<8x64xf32>
    %c0_45 = arith.constant 0 : index
    %c0_46 = arith.constant 0 : index
    %109 = vector.load %arg6[%c0_45, %c0_46] : memref<64x128xf32, #tpu.memory_space<vmem>>, vector<64x128xf32>
    %c8 = arith.constant 8 : index
    %c0_47 = arith.constant 0 : index
    %110 = vector.load %arg7[%c8, %c0_47] : memref<9x512xf32, #tpu.memory_space<vmem>>, vector<1x128xf32>
    %cst_48 = arith.constant dense<0.000000e+00> : vector<8x128xf32>
    %111 = tpu.matmul %108, %109, %cst_48 {dimension_numbers = #tpu.dot_dimension_numbers<[1], [0], [0], [1], [0, 0, 1, 1], [], []>} : vector<8x64xf32>, vector<64x128xf32>, vector<8x128xf32> -> vector<8x128xf32>
    %112 = vector.broadcast %110 : vector<1x128xf32> to vector<8x128xf32>
    %113 = arith.addf %111, %112 : vector<8x128xf32>
    %114 = math.tanh %113 : vector<8x128xf32>
    %c0_49 = arith.constant 0 : index
    %c0_50 = arith.constant 0 : index
    %115 = vector.load %arg8[%c0_49, %c0_50] : memref<8x128xf32, #tpu.memory_space<vmem>>, vector<8x128xf32>
    tpu.vector_store %arg8[%c0_49, %c0_50], %114 {strides = array<i32>} : memref<8x128xf32, #tpu.memory_space<vmem>>, vector<8x128xf32>,
    return
  }
  func.func @transform_0(%arg0: i32) -> (i32, i32) {
    %c0_i32 = arith.constant 0 : i32
    %c0_i32_0 = arith.constant 0 : i32
    return %arg0, %c0_i32 : i32, i32
  }
  func.func @transform_1(%arg0: i32) -> (i32, i32) {
    %c0_i32 = arith.constant 0 : i32
    %c0_i32_0 = arith.constant 0 : i32
    %c0_i32_1 = arith.constant 0 : i32
    return %c0_i32, %c0_i32_0 : i32, i32
  }
  func.func @transform_2(%arg0: i32) -> (i32, i32) {
    %c0_i32 = arith.constant 0 : i32
    %c0_i32_0 = arith.constant 0 : i32
    %c0_i32_1 = arith.constant 0 : i32
    return %c0_i32, %c0_i32_0 : i32, i32
  }
  func.func @transform_3(%arg0: i32) -> (i32, i32) {
    %c0_i32 = arith.constant 0 : i32
    %c0_i32_0 = arith.constant 0 : i32
    %c0_i32_1 = arith.constant 0 : i32
    return %c0_i32, %c0_i32_0 : i32, i32
  }
  func.func @transform_4(%arg0: i32) -> (i32, i32) {
    %c0_i32 = arith.constant 0 : i32
    %c0_i32_0 = arith.constant 0 : i32
    %c0_i32_1 = arith.constant 0 : i32
    return %c0_i32, %c0_i32_0 : i32, i32
  }
  func.func @transform_5(%arg0: i32) -> (i32, i32) {
    %c0_i32 = arith.constant 0 : i32
    %c0_i32_0 = arith.constant 0 : i32
    %c0_i32_1 = arith.constant 0 : i32
    return %c0_i32, %c0_i32_0 : i32, i32
  }
  func.func @transform_6(%arg0: i32) -> (i32, i32) {
    %c0_i32 = arith.constant 0 : i32
    %c0_i32_0 = arith.constant 0 : i32
    %c0_i32_1 = arith.constant 0 : i32
    return %c0_i32, %c0_i32_0 : i32, i32
  }
  func.func @transform_7(%arg0: i32) -> (i32, i32) {
    %c0_i32 = arith.constant 0 : i32
    %c0_i32_0 = arith.constant 0 : i32
    return %arg0, %c0_i32 : i32, i32
  }
}

</mosaic_0001>

<llo_original>
// kernel: generator_forward.1
$region0: #{generator_forward.1}
  #allocation0 [shape = 'u32[]', space=smem, size = 0x4, offset = 0x4, fixed_abs, tag = 'smem constant byte address 0x4 - core index']
  #allocation1 [shape = 'u32[144,128]{1,0:T(1,128)}', space=vmem, size = 0x12000, scoped, tag = 'internal scratch']
  %s0 = inlined_call_operand.vmem [shape: f32[8,32], index: 0, kind: input, shape index: {}]
  %s1 = inlined_call_operand.vmem [shape: f32[32,512], index: 1, kind: input, shape index: {}]
  %s2 = inlined_call_operand.hbm [shape: f32[512,256], index: 2, kind: input, shape index: {}]
  %s3 = inlined_call_operand.hbm [shape: f32[256,128], index: 3, kind: input, shape index: {}]
  %s4 = inlined_call_operand.vmem [shape: f32[128,64], index: 4, kind: input, shape index: {}]
  %s5 = inlined_call_operand.vmem [shape: f32[64,128], index: 5, kind: input, shape index: {}]
  %s6 = inlined_call_operand.hbm [shape: f32[9,512], index: 6, kind: input, shape index: {}]
  %s7 = inlined_call_operand.hbm [shape: f32[8,128], index: 7, kind: output, shape index: {}]
  %s8 = sld [smem:[#allocation0]]
  $region50: #{generator_forward.1} parent=0
    _
  %s10 = ssub.s32 1, %s8
  %s11 = scalar_select 0, %s10, %s8
  $region1: #{generator_forward.1} parent=0
    #allocation2 [shape = 'u8[524288]{0}', space=vmem, size = 0x80000, scoped, tag = 'input window, operand 2, single buffered']
    #allocation3 [shape = 's32[1]{0}', space=sflag, size = 0x4, scoped, tag = 'scoped memory for generator_forward.1']
    #allocation4 [shape = 's32[1]{0}', space=sflag, size = 0x4, scoped, tag = 'scoped memory for generator_forward.1']
    #allocation5 [shape = 'u8[131072]{0}', space=vmem, size = 0x20000, scoped, tag = 'input window, operand 3, single buffered']
    #allocation6 [shape = 's32[1]{0}', space=sflag, size = 0x4, scoped, tag = 'scoped memory for generator_forward.1']
    #allocation7 [shape = 'u8[32768]{0}', space=vmem, size = 0x8000, scoped, tag = 'input window, operand 6, single buffered']
    #allocation8 [shape = 'u8[4096]{0}', space=vmem, size = 0x1000, scoped, tag = 'output window, operand 0, single buffered']
    %12 = vsyncpa [#allocation3], 0
    %13 = vsyncpa [#allocation6], 0
    %14 = vsyncpa [#allocation4], 0
    // Predicated region
    $region2: #{generator_forward.1} parent=1 // pred_check
      _
    $region3: #{generator_forward.1} parent=1 // pred_check_branch
      %16 = sbr.rel (0) target = $region5
    $region4: #{generator_forward.1} parent=1 // pred_region
      _
    $region5: #{generator_forward.1} parent=1 // pred_fallthru
      _
    // Predicated region
    $region6: #{generator_forward.1} parent=1 // pred_check
      _
    $region7: #{generator_forward.1} parent=1 // pred_check_branch
      %18 = sbr.rel (0) target = $region9
    $region8: #{generator_forward.1} parent=1 // pred_region
      _
    $region9: #{generator_forward.1} parent=1 // pred_fallthru
      _
    // Predicated region
    $region10: #{generator_forward.1} parent=1 // pred_check
      _
    $region11: #{generator_forward.1} parent=1 // pred_check_branch
      %20 = sbr.rel (0) target = $region13
    $region12: #{generator_forward.1} parent=1 // pred_region
      %s22 = ssub.s32 16384, 16384
      %23 = vsyncadd [#allocation3], %s22
      %s24 = sshll.u32 [#allocation2], 4
      %s25 = int_to_ptr.vmem [resolvable:$true] %s24
      %30 = dma.hbm_to_vmem [thread:$0]  %s2, 16384, %s25, [#allocation3], 256, 256, 16
    $region13: #{generator_forward.1} parent=1 // pred_fallthru
      _
    // Predicated region
    $region14: #{generator_forward.1} parent=1 // pred_check
      _
    $region15: #{generator_forward.1} parent=1 // pred_check_branch
      %32 = sbr.rel (0) target = $region17
    $region16: #{generator_forward.1} parent=1 // pred_region
      %s34 = ssub.s32 4096, 4096
      %35 = vsyncadd [#allocation6], %s34
      %s36 = sshll.u32 [#allocation5], 4
      %s37 = int_to_ptr.vmem [resolvable:$true] %s36
      %42 = dma.hbm_to_vmem [thread:$0]  %s3, 4096, %s37, [#allocation6], 128, 128, 8
    $region17: #{generator_forward.1} parent=1 // pred_fallthru
      _
    // Predicated region
    $region18: #{generator_forward.1} parent=1 // pred_check
      _
    $region19: #{generator_forward.1} parent=1 // pred_check_branch
      %44 = sbr.rel (0) target = $region21
    $region20: #{generator_forward.1} parent=1 // pred_region
      _
    $region21: #{generator_forward.1} parent=1 // pred_fallthru
      _
    // Predicated region
    $region22: #{generator_forward.1} parent=1 // pred_check
      _
    $region23: #{generator_forward.1} parent=1 // pred_check_branch
      %46 = sbr.rel (0) target = $region25
    $region24: #{generator_forward.1} parent=1 // pred_region
      _
    $region25: #{generator_forward.1} parent=1 // pred_fallthru
      _
    // Predicated region
    $region26: #{generator_forward.1} parent=1 // pred_check
      _
    $region27: #{generator_forward.1} parent=1 // pred_check_branch
      %48 = sbr.rel (0) target = $region29
    $region28: #{generator_forward.1} parent=1 // pred_region
      %s50 = ssub.s32 1024, 1024
      %51 = vsyncadd [#allocation6], %s50
      %s52 = sshll.u32 [#allocation7], 4
      %s53 = int_to_ptr.vmem [resolvable:$true] %s52
      %58 = dma.hbm_to_vmem [thread:$0]  %s6, 1024, %s53, [#allocation6], 512, 512, 32
    $region29: #{generator_forward.1} parent=1 // pred_fallthru
      _
    // Predicated region
    $region30: #{generator_forward.1} parent=1 // pred_check
      _
    $region31: #{generator_forward.1} parent=1 // pred_check_branch
      %60 = sbr.rel (0) target = $region33
    $region32: #{generator_forward.1} parent=1 // pred_region
      %61 = dma.done [#allocation3], 16384
    $region33: #{generator_forward.1} parent=1 // pred_fallthru
      _
    // Predicated region
    $region34: #{generator_forward.1} parent=1 // pred_check
      _
    $region35: #{generator_forward.1} parent=1 // pred_check_branch
      %63 = sbr.rel (0) target = $region37
    $region36: #{generator_forward.1} parent=1 // pred_region
      %64 = dma.done [#allocation6], 4096
    $region37: #{generator_forward.1} parent=1 // pred_fallthru
      _
    // Predicated region
    $region38: #{generator_forward.1} parent=1 // pred_check
      _
    $region39: #{generator_forward.1} parent=1 // pred_check_branch
      %66 = sbr.rel (0) target = $region41
    $region40: #{generator_forward.1} parent=1 // pred_region
      %67 = dma.done [#allocation6], 1024
    $region41: #{generator_forward.1} parent=1 // pred_fallthru
      _
    %v68 = vld [vmem:[%s0] sm:$0xff]
    %v69 = vld [vmem:[%s1] sm:$0xff]
    %v70 = vld [vmem:[%s1 + $0x8] sm:$0xff]
    %v71 = vld [vmem:[%s1 + $0x10] sm:$0xff]
    %v72 = vld [vmem:[%s1 + $0x18] sm:$0xff]
    %v73 = vld [vmem:[%s1 + $0x20] sm:$0xff]
    %v74 = vld [vmem:[%s1 + $0x28] sm:$0xff]
    %v75 = vld [vmem:[%s1 + $0x30] sm:$0xff]
    %v76 = vld [vmem:[%s1 + $0x38] sm:$0xff]
    %v77 = vld [vmem:[%s1 + $0x40] sm:$0xff]
    %v78 = vld [vmem:[%s1 + $0x48] sm:$0xff]
    %v79 = vld [vmem:[%s1 + $0x50] sm:$0xff]
    %v80 = vld [vmem:[%s1 + $0x58] sm:$0xff]
    %v81 = vld [vmem:[%s1 + $0x60] sm:$0xff]
    %v82 = vld [vmem:[%s1 + $0x68] sm:$0xff]
    %v83 = vld [vmem:[%s1 + $0x70] sm:$0xff]
    %v84 = vld [vmem:[%s1 + $0x78] sm:$0xff]
    %vm85 = vcmask 261120
    %v87 = vsel %vm85, %v68, 0
    %89 = vmatprep.subr.mxu0 %v70
    %90 = vmatpush1.msra.mxu0 %v69
    %91 = vmatprep.subr.mxu0 %v74
    %92 = vmatpush1.msra.mxu0 %v73
    %93 = vmatprep.subr.mxu0 %v78
    %94 = vmatpush1.msra.mxu0 %v77
    %95 = vmatprep.subr.mxu0 %v82
    %96 = vmatpush1.msra.mxu0 %v81
    %97 = vmatprep.subr.mxu0 0.0
    %98 = vmatpush1.msra.mxu0 0.0
    %99 = vmatprep.subr.mxu0 0.0
    %100 = vmatpush1.msra.mxu0 0.0
    %101 = vmatprep.subr.mxu0 0.0
    %102 = vmatpush1.msra.mxu0 0.0
    %103 = vmatprep.subr.mxu0 0.0
    %104 = vmatpush1.msra.mxu0 0.0
    %105 = vmatprep.subr.mxu0 0.0
    %106 = vmatpush1.msra.mxu0 0.0
    %107 = vmatprep.subr.mxu0 0.0
    %108 = vmatpush1.msra.mxu0 0.0
    %109 = vmatprep.subr.mxu0 0.0
    %110 = vmatpush1.msra.mxu0 0.0
    %111 = vmatprep.subr.mxu0 0.0
    %112 = vmatpush1.msra.mxu0 0.0
    %113 = vmatprep.subr.mxu0 0.0
    %114 = vmatpush1.msra.mxu0 0.0
    %115 = vmatprep.subr.mxu0 0.0
    %116 = vmatpush1.msra.mxu0 0.0
    %117 = vmatprep.subr.mxu0 0.0
    %118 = vmatpush1.msra.mxu0 0.0
    %119 = vmatprep.subr.mxu0 0.0
    %120 = vmatpush1.msra.mxu0 0.0
    %121 = vmatprep.subr.mxu0 0.0
    %122 = vmatpush1.msra.mxu0 0.0
    %123 = vmatprep.subr.mxu0 0.0
    %124 = vmatpush1.msra.mxu0 0.0
    %125 = vmatprep.subr.mxu0 0.0
    %126 = vmatpush1.msra.mxu0 0.0
    %127 = vmatprep.subr.mxu0 0.0
    %128 = vmatpush1.msra.mxu0 0.0
    %129 = vmatprep.subr.mxu0 0.0
    %130 = vmatpush1.msra.mxu0 0.0
    %131 = vmatprep.subr.mxu0 0.0
    %132 = vmatpush1.msra.mxu0 0.0
    %133 = vmatprep.subr.mxu0 0.0
    %134 = vmatpush1.msra.mxu0 0.0
    %135 = vmatprep.subr.mxu0 0.0
    %136 = vmatpush1.msra.mxu0 0.0
    %137 = vmatprep.subr.mxu0 0.0
    %138 = vmatpush1.msra.mxu0 0.0
    %139 = vmatprep.subr.mxu0 0.0
    %140 = vmatpush1.msra.mxu0 0.0
    %141 = vmatprep.subr.mxu0 0.0
    %142 = vmatpush1.msra.mxu0 0.0
    %143 = vmatprep.subr.mxu0 0.0
    %144 = vmatpush1.msra.mxu0 0.0
    %145 = vmatprep.subr.mxu0 0.0
    %146 = vmatpush1.msra.mxu0 0.0
    %147 = vmatprep.subr.mxu0 0.0
    %148 = vmatpush1.msra.mxu0 0.0
    %149 = vmatprep.subr.mxu0 0.0
    %150 = vmatpush1.msra.mxu0 0.0
    %151 = vmatprep.subr.mxu0 0.0
    %152 = vmatpush1.msra.mxu0 0.0
    %153 = vmatprep.mubr.f32.mxu0 0.0
    %154 = vmatmul.mubr.f32.gmra.mrb[0].mxu0 %v87
    %v155 = vpop.f32.mrb[0].mxu0
    %v156 = vadd.f32 0.0, %v155
    %v157 = vpop.f32.mrb[0].mxu0
    %v158 = vadd.f32 0.0, %v157
    %159 = vdwg.mxu0
    %160 = vmatprep.subr.mxu0 %v72
    %161 = vmatpush1.msra.mxu0 %v71
    %162 = vmatprep.subr.mxu0 %v76
    %163 = vmatpush1.msra.mxu0 %v75
    %164 = vmatprep.subr.mxu0 %v80
    %165 = vmatpush1.msra.mxu0 %v79
    %166 = vmatprep.subr.mxu0 %v84
    %167 = vmatpush1.msra.mxu0 %v83
    %168 = vmatprep.subr.mxu0 0.0
    %169 = vmatpush1.msra.mxu0 0.0
    %170 = vmatprep.subr.mxu0 0.0
    %171 = vmatpush1.msra.mxu0 0.0
    %172 = vmatprep.subr.mxu0 0.0
    %173 = vmatpush1.msra.mxu0 0.0
    %174 = vmatprep.subr.mxu0 0.0
    %175 = vmatpush1.msra.mxu0 0.0
    %176 = vmatprep.subr.mxu0 0.0
    %177 = vmatpush1.msra.mxu0 0.0
    %178 = vmatprep.subr.mxu0 0.0
    %179 = vmatpush1.msra.mxu0 0.0
    %180 = vmatprep.subr.mxu0 0.0
    %181 = vmatpush1.msra.mxu0 0.0
    %182 = vmatprep.subr.mxu0 0.0
    %183 = vmatpush1.msra.mxu0 0.0
    %184 = vmatprep.subr.mxu0 0.0
    %185 = vmatpush1.msra.mxu0 0.0
    %186 = vmatprep.subr.mxu0 0.0
    %187 = vmatpush1.msra.mxu0 0.0
    %188 = vmatprep.subr.mxu0 0.0
    %189 = vmatpush1.msra.mxu0 0.0
    %190 = vmatprep.subr.mxu0 0.0
    %191 = vmatpush1.msra.mxu0 0.0
    %192 = vmatprep.subr.mxu0 0.0
    %193 = vmatpush1.msra.mxu0 0.0
    %194 = vmatprep.subr.mxu0 0.0
    %195 = vmatpush1.msra.mxu0 0.0
    %196 = vmatprep.subr.mxu0 0.0
    %197 = vmatpush1.msra.mxu0 0.0
    %198 = vmatprep.subr.mxu0 0.0
    %199 = vmatpush1.msra.mxu0 0.0
    %200 = vmatprep.subr.mxu0 0.0
    %201 = vmatpush1.msra.mxu0 0.0
    %202 = vmatprep.subr.mxu0 0.0
    %203 = vmatpush1.msra.mxu0 0.0
    %204 = vmatprep.subr.mxu0 0.0
    %205 = vmatpush1.msra.mxu0 0.0
    %206 = vmatprep.subr.mxu0 0.0
    %207 = vmatpush1.msra.mxu0 0.0
    %208 = vmatprep.subr.mxu0 0.0
    %209 = vmatpush1.msra.mxu0 0.0
    %210 = vmatprep.subr.mxu0 0.0
    %211 = vmatpush1.msra.mxu0 0.0
    %212 = vmatprep.subr.mxu0 0.0
    %213 = vmatpush1.msra.mxu0 0.0
    %214 = vmatprep.subr.mxu0 0.0
    %215 = vmatpush1.msra.mxu0 0.0
    %216 = vmatprep.subr.mxu0 0.0
    %217 = vmatpush1.msra.mxu0 0.0
    %218 = vmatprep.subr.mxu0 0.0
    %219 = vmatpush1.msra.mxu0 0.0
    %220 = vmatprep.subr.mxu0 0.0
    %221 = vmatpush1.msra.mxu0 0.0
    %222 = vmatprep.subr.mxu0 0.0
    %223 = vmatpush1.msra.mxu0 0.0
    %224 = vmatprep.mubr.f32.mxu0 0.0
    %225 = vmatmul.mubr.f32.gmra.mrb[0].mxu0 %v87
    %v226 = vpop.f32.mrb[0].mxu0
    %v227 = vadd.f32 0.0, %v226
    %v228 = vpop.f32.mrb[0].mxu0
    %v229 = vadd.f32 0.0, %v228
    %230 = vdwg.mxu0
    %v231 = vrot.slane %v156, 4
    %v232 = vadd.f32 %v156, %v231
    %v233 = vrot.slane %v232, 2
    %v234 = vadd.f32 %v232, %v233
    %v235 = vrot.slane %v234, 1
    %v236 = vadd.f32 %v234, %v235
    %v237 = vrot.slane %v158, 4
    %v238 = vadd.f32 %v158, %v237
    %v239 = vrot.slane %v238, 2
    %v240 = vadd.f32 %v238, %v239
    %v241 = vrot.slane %v240, 1
    %v242 = vadd.f32 %v240, %v241
    %v243 = vrot.slane %v227, 4
    %v244 = vadd.f32 %v227, %v243
    %v245 = vrot.slane %v244, 2
    %v246 = vadd.f32 %v244, %v245
    %v247 = vrot.slane %v246, 1
    %v248 = vadd.f32 %v246, %v247
    %v249 = vrot.slane %v229, 4
    %v250 = vadd.f32 %v229, %v249
    %v251 = vrot.slane %v250, 2
    %v252 = vadd.f32 %v250, %v251
    %v253 = vrot.slane %v252, 1
    %v254 = vadd.f32 %v252, %v253
    %v255 = vmul.f32 %v236, 0.125
    %v256 = vmul.f32 %v242, 0.125
    %v257 = vmul.f32 %v248, 0.125
    %v258 = vmul.f32 %v254, 0.125
    %v259 = vmul.f32 %v156, %v156
    %v260 = vmul.f32 %v158, %v158
    %v261 = vmul.f32 %v227, %v227
    %v262 = vmul.f32 %v229, %v229
    %v263 = vrot.slane %v259, 4
    %v264 = vadd.f32 %v259, %v263
    %v265 = vrot.slane %v264, 2
    %v266 = vadd.f32 %v264, %v265
    %v267 = vrot.slane %v266, 1
    %v268 = vadd.f32 %v266, %v267
    %v269 = vrot.slane %v260, 4
    %v270 = vadd.f32 %v260, %v269
    %v271 = vrot.slane %v270, 2
    %v272 = vadd.f32 %v270, %v271
    %v273 = vrot.slane %v272, 1
    %v274 = vadd.f32 %v272, %v273
    %v275 = vrot.slane %v261, 4
    %v276 = vadd.f32 %v261, %v275
    %v277 = vrot.slane %v276, 2
    %v278 = vadd.f32 %v276, %v277
    %v279 = vrot.slane %v278, 1
    %v280 = vadd.f32 %v278, %v279
    %v281 = vrot.slane %v262, 4
    %v282 = vadd.f32 %v262, %v281
    %v283 = vrot.slane %v282, 2
    %v284 = vadd.f32 %v282, %v283
    %v285 = vrot.slane %v284, 1
    %v286 = vadd.f32 %v284, %v285
    %v287 = vmul.f32 %v268, 0.125
    %v288 = vmul.f32 %v274, 0.125
    %v289 = vmul.f32 %v280, 0.125
    %v290 = vmul.f32 %v286, 0.125
    %v291 = vmul.f32 %v255, %v255
    %v292 = vmul.f32 %v256, %v256
    %v293 = vmul.f32 %v257, %v257
    %v294 = vmul.f32 %v258, %v258
    %v295 = vsub.f32 %v287, %v291
    %v296 = vsub.f32 %v288, %v292
    %v297 = vsub.f32 %v289, %v293
    %v298 = vsub.f32 %v290, %v294
    %v299 = vld [vmem:[#allocation7] ss:$8 sm:$0xf]
    %s300 = scalar_lea.vmem [#allocation7], 1
    %v301 = vld [vmem:[%s300] ss:$8 sm:$0xf]
    %v302 = vadd.f32 %v295, 1e-05
    %v303 = vadd.f32 %v296, 1e-05
    %v304 = vadd.f32 %v297, 1e-05
    %v305 = vadd.f32 %v298, 1e-05
    %v306 = vrsqrt.pop %v302
    %v307 = vrsqrt.pop %v303
    %v308 = vrsqrt.pop %v304
    %v309 = vrsqrt.pop %v305
    %v314 = vcombine.low %v306, %v307
    %v315 = vcombine.low %v308, %v309
    %v317 = vunpack.c.l.s4 1966171168
    %v318 = vunpack.c.0.s8 %v317
    %v319 = vlaneseq
    %v320 = vshrl.u32 %v319, 7
    %v321 = vsub.s32 %v318, %v320
    %v322 = vrot.slane %v314, %v321
    %v324 = vunpack.c.l.s4 1966171168
    %v325 = vunpack.c.0.s8 %v324
    %v326 = vlaneseq
    %v327 = vshrl.u32 %v326, 7
    %v328 = vsub.s32 %v325, %v327
    %v329 = vrot.slane %v315, %v328
    %v330 = vcombine.low %v322, %v329
    %v332 = vunpack.c.l.s4 1966171168
    %v333 = vunpack.c.0.s8 %v332
    %v334 = vlaneseq
    %v335 = vshrl.u32 %v334, 7
    %v336 = vsub.s32 %v333, %v335
    %v337 = vrot.slane %v330, %v336
    %v339 = vmul.f32 %v299, %v337
    %v341 = vlaneseq
    %v342 = vshrl.u32 %v341, 7
    %v343 = vsub.s32 0, %v342
    %v344 = vrot.slane %v339, %v343
    %v345 = vlaneseq
    %v346 = vshrl.u32 %v345, 7
    %v347 = vsub.s32 1, %v346
    %v348 = vrot.slane %v339, %v347
    %v349 = vlaneseq
    %v350 = vshrl.u32 %v349, 7
    %v351 = vsub.s32 2, %v350
    %v352 = vrot.slane %v339, %v351
    %v353 = vlaneseq
    %v354 = vshrl.u32 %v353, 7
    %v355 = vsub.s32 3, %v354
    %v356 = vrot.slane %v339, %v355
    %v361 = vmul.f32 %v255, %v344
    %v362 = vmul.f32 %v256, %v348
    %v363 = vmul.f32 %v257, %v352
    %v364 = vmul.f32 %v258, %v356
    %v369 = vcombine.low %v361, %v362
    %v370 = vcombine.low %v363, %v364
    %v372 = vunpack.c.l.s4 1966171168
    %v373 = vunpack.c.0.s8 %v372
    %v374 = vlaneseq
    %v375 = vshrl.u32 %v374, 7
    %v376 = vsub.s32 %v373, %v375
    %v377 = vrot.slane %v369, %v376
    %v379 = vunpack.c.l.s4 1966171168
    %v380 = vunpack.c.0.s8 %v379
    %v381 = vlaneseq
    %v382 = vshrl.u32 %v381, 7
    %v383 = vsub.s32 %v380, %v382
    %v384 = vrot.slane %v370, %v383
    %v385 = vcombine.low %v377, %v384
    %v387 = vunpack.c.l.s4 1966171168
    %v388 = vunpack.c.0.s8 %v387
    %v389 = vlaneseq
    %v390 = vshrl.u32 %v389, 7
    %v391 = vsub.s32 %v388, %v390
    %v392 = vrot.slane %v385, %v391
    %v394 = vsub.f32 %v301, %v392
    %v395 = vmul.f32 %v156, %v344
    %v396 = vmul.f32 %v158, %v348
    %v397 = vmul.f32 %v227, %v352
    %v398 = vmul.f32 %v229, %v356
    %v400 = vlaneseq
    %v401 = vshrl.u32 %v400, 7
    %v402 = vsub.s32 0, %v401
    %v403 = vrot.slane %v394, %v402
    %v404 = vlaneseq
    %v405 = vshrl.u32 %v404, 7
    %v406 = vsub.s32 1, %v405
    %v407 = vrot.slane %v394, %v406
    %v408 = vlaneseq
    %v409 = vshrl.u32 %v408, 7
    %v410 = vsub.s32 2, %v409
    %v411 = vrot.slane %v394, %v410
    %v412 = vlaneseq
    %v413 = vshrl.u32 %v412, 7
    %v414 = vsub.s32 3, %v413
    %v415 = vrot.slane %v394, %v414
    %v420 = vadd.f32 %v395, %v403
    %v421 = vadd.f32 %v396, %v407
    %v422 = vadd.f32 %v397, %v411
    %v423 = vadd.f32 %v398, %v415
    %v424 = vmax.f32 %v420, 0.0
    %v425 = vmax.f32 %v421, 0.0
    %v426 = vmax.f32 %v422, 0.0
    %v427 = vmax.f32 %v423, 0.0
    %v428 = vld [vmem:[#allocation2] sm:$0xff]
    %v429 = vld [vmem:[#allocation2 + $0x8] sm:$0xff]
    %v430 = vld [vmem:[#allocation2 + $0x10] sm:$0xff]
    %v431 = vld [vmem:[#allocation2 + $0x18] sm:$0xff]
    %v432 = vld [vmem:[#allocation2 + $0x20] sm:$0xff]
    %v433 = vld [vmem:[#allocation2 + $0x28] sm:$0xff]
    %v434 = vld [vmem:[#allocation2 + $0x30] sm:$0xff]
    %v435 = vld [vmem:[#allocation2 + $0x38] sm:$0xff]
    %v436 = vld [vmem:[#allocation2 + $0x40] sm:$0xff]
    %v437 = vld [vmem:[#allocation2 + $0x48] sm:$0xff]
    %v438 = vld [vmem:[#allocation2 + $0x50] sm:$0xff]
    %v439 = vld [vmem:[#allocation2 + $0x58] sm:$0xff]
    %v440 = vld [vmem:[#allocation2 + $0x60] sm:$0xff]
    %v441 = vld [vmem:[#allocation2 + $0x68] sm:$0xff]
    %v442 = vld [vmem:[#allocation2 + $0x70] sm:$0xff]
    %v443 = vld [vmem:[#allocation2 + $0x78] sm:$0xff]
    %v444 = vld [vmem:[#allocation2 + $0x80] sm:$0xff]
    %v445 = vld [vmem:[#allocation2 + $0x88] sm:$0xff]
    %v446 = vld [vmem:[#allocation2 + $0x90] sm:$0xff]
    %v447 = vld [vmem:[#allocation2 + $0x98] sm:$0xff]
    %v448 = vld [vmem:[#allocation2 + $0xa0] sm:$0xff]
    %v449 = vld [vmem:[#allocation2 + $0xa8] sm:$0xff]
    %v450 = vld [vmem:[#allocation2 + $0xb0] sm:$0xff]
    %v451 = vld [vmem:[#allocation2 + $0xb8] sm:$0xff]
    %v452 = vld [vmem:[#allocation2 + $0xc0] sm:$0xff]
    %v453 = vld [vmem:[#allocation2 + $0xc8] sm:$0xff]
    %v454 = vld [vmem:[#allocation2 + $0xd0] sm:$0xff]
    %v455 = vld [vmem:[#allocation2 + $0xd8] sm:$0xff]
    %v456 = vld [vmem:[#allocation2 + $0xe0] sm:$0xff]
    %v457 = vld [vmem:[#allocation2 + $0xe8] sm:$0xff]
    %v458 = vld [vmem:[#allocation2 + $0xf0] sm:$0xff]
    %v459 = vld [vmem:[#allocation2 + $0xf8] sm:$0xff]
    %v460 = vld [vmem:[#allocation2 + $0x100] sm:$0xff]
    %v461 = vld [vmem:[#allocation2 + $0x108] sm:$0xff]
    %v462 = vld [vmem:[#allocation2 + $0x110] sm:$0xff]
    %v463 = vld [vmem:[#allocation2 + $0x118] sm:$0xff]
    %v464 = vld [vmem:[#allocation2 + $0x120] sm:$0xff]
    %v465 = vld [vmem:[#allocation2 + $0x128] sm:$0xff]
    %v466 = vld [vmem:[#allocation2 + $0x130] sm:$0xff]
    %v467 = vld [vmem:[#allocation2 + $0x138] sm:$0xff]
    %v468 = vld [vmem:[#allocation2 + $0x140] sm:$0xff]
    %v469 = vld [vmem:[#allocation2 + $0x148] sm:$0xff]
    %v470 = vld [vmem:[#allocation2 + $0x150] sm:$0xff]
    %v471 = vld [vmem:[#allocation2 + $0x158] sm:$0xff]
    %v472 = vld [vmem:[#allocation2 + $0x160] sm:$0xff]
    %v473 = vld [vmem:[#allocation2 + $0x168] sm:$0xff]
    %v474 = vld [vmem:[#allocation2 + $0x170] sm:$0xff]
    %v475 = vld [vmem:[#allocation2 + $0x178] sm:$0xff]
    %v476 = vld [vmem:[#allocation2 + $0x180] sm:$0xff]
    %v477 = vld [vmem:[#allocation2 + $0x188] sm:$0xff]
    %v478 = vld [vmem:[#allocation2 + $0x190] sm:$0xff]
    %v479 = vld [vmem:[#allocation2 + $0x198] sm:$0xff]
    %v480 = vld [vmem:[#allocation2 + $0x1a0] sm:$0xff]
    %v481 = vld [vmem:[#allocation2 + $0x1a8] sm:$0xff]
    %v482 = vld [vmem:[#allocation2 + $0x1b0] sm:$0xff]
    %v483 = vld [vmem:[#allocation2 + $0x1b8] sm:$0xff]
    %v484 = vld [vmem:[#allocation2 + $0x1c0] sm:$0xff]
    %v485 = vld [vmem:[#allocation2 + $0x1c8] sm:$0xff]
    %v486 = vld [vmem:[#allocation2 + $0x1d0] sm:$0xff]
    %v487 = vld [vmem:[#allocation2 + $0x1d8] sm:$0xff]
    %v488 = vld [vmem:[#allocation2 + $0x1e0] sm:$0xff]
    %v489 = vld [vmem:[#allocation2 + $0x1e8] sm:$0xff]
    %v490 = vld [vmem:[#allocation2 + $0x1f0] sm:$0xff]
    %v491 = vld [vmem:[#allocation2 + $0x1f8] sm:$0xff]
    %v492 = vld [vmem:[#allocation2 + $0x200] sm:$0xff]
    %v493 = vld [vmem:[#allocation2 + $0x208] sm:$0xff]
    %v494 = vld [vmem:[#allocation2 + $0x210] sm:$0xff]
    %v495 = vld [vmem:[#allocation2 + $0x218] sm:$0xff]
    %v496 = vld [vmem:[#allocation2 + $0x220] sm:$0xff]
    %v497 = vld [vmem:[#allocation2 + $0x228] sm:$0xff]
    %v498 = vld [vmem:[#allocation2 + $0x230] sm:$0xff]
    %v499 = vld [vmem:[#allocation2 + $0x238] sm:$0xff]
    %v500 = vld [vmem:[#allocation2 + $0x240] sm:$0xff]
    %v501 = vld [vmem:[#allocation2 + $0x248] sm:$0xff]
    %v502 = vld [vmem:[#allocation2 + $0x250] sm:$0xff]
    %v503 = vld [vmem:[#allocation2 + $0x258] sm:$0xff]
    %v504 = vld [vmem:[#allocation2 + $0x260] sm:$0xff]
    %v505 = vld [vmem:[#allocation2 + $0x268] sm:$0xff]
    %v506 = vld [vmem:[#allocation2 + $0x270] sm:$0xff]
    %v507 = vld [vmem:[#allocation2 + $0x278] sm:$0xff]
    %v508 = vld [vmem:[#allocation2 + $0x280] sm:$0xff]
    %v509 = vld [vmem:[#allocation2 + $0x288] sm:$0xff]
    %v510 = vld [vmem:[#allocation2 + $0x290] sm:$0xff]
    %v511 = vld [vmem:[#allocation2 + $0x298] sm:$0xff]
    %v512 = vld [vmem:[#allocation2 + $0x2a0] sm:$0xff]
    %v513 = vld [vmem:[#allocation2 + $0x2a8] sm:$0xff]
    %v514 = vld [vmem:[#allocation2 + $0x2b0] sm:$0xff]
    %v515 = vld [vmem:[#allocation2 + $0x2b8] sm:$0xff]
    %v516 = vld [vmem:[#allocation2 + $0x2c0] sm:$0xff]
    %v517 = vld [vmem:[#allocation2 + $0x2c8] sm:$0xff]
    %v518 = vld [vmem:[#allocation2 + $0x2d0] sm:$0xff]
    %v519 = vld [vmem:[#allocation2 + $0x2d8] sm:$0xff]
    %v520 = vld [vmem:[#allocation2 + $0x2e0] sm:$0xff]
    %v521 = vld [vmem:[#allocation2 + $0x2e8] sm:$0xff]
    %v522 = vld [vmem:[#allocation2 + $0x2f0] sm:$0xff]
    %v523 = vld [vmem:[#allocation2 + $0x2f8] sm:$0xff]
    %v524 = vld [vmem:[#allocation2 + $0x300] sm:$0xff]
    %v525 = vld [vmem:[#allocation2 + $0x308] sm:$0xff]
    %v526 = vld [vmem:[#allocation2 + $0x310] sm:$0xff]
    %v527 = vld [vmem:[#allocation2 + $0x318] sm:$0xff]
    %v528 = vld [vmem:[#allocation2 + $0x320] sm:$0xff]
    %v529 = vld [vmem:[#allocation2 + $0x328] sm:$0xff]
    %v530 = vld [vmem:[#allocation2 + $0x330] sm:$0xff]
    %v531 = vld [vmem:[#allocation2 + $0x338] sm:$0xff]
    %v532 = vld [vmem:[#allocation2 + $0x340] sm:$0xff]
    %v533 = vld [vmem:[#allocation2 + $0x348] sm:$0xff]
    %v534 = vld [vmem:[#allocation2 + $0x350] sm:$0xff]
    %v535 = vld [vmem:[#allocation2 + $0x358] sm:$0xff]
    %v536 = vld [vmem:[#allocation2 + $0x360] sm:$0xff]
    %v537 = vld [vmem:[#allocation2 + $0x368] sm:$0xff]
    %v538 = vld [vmem:[#allocation2 + $0x370] sm:$0xff]
    %v539 = vld [vmem:[#allocation2 + $0x378] sm:$0xff]
    %v540 = vld [vmem:[#allocation2 + $0x380] sm:$0xff]
    %v541 = vld [vmem:[#allocation2 + $0x388] sm:$0xff]
    %v542 = vld [vmem:[#allocation2 + $0x390] sm:$0xff]
    %v543 = vld [vmem:[#allocation2 + $0x398] sm:$0xff]
    %v544 = vld [vmem:[#allocation2 + $0x3a0] sm:$0xff]
    %v545 = vld [vmem:[#allocation2 + $0x3a8] sm:$0xff]
    %v546 = vld [vmem:[#allocation2 + $0x3b0] sm:$0xff]
    %v547 = vld [vmem:[#allocation2 + $0x3b8] sm:$0xff]
    %v548 = vld [vmem:[#allocation2 + $0x3c0] sm:$0xff]
    %v549 = vld [vmem:[#allocation2 + $0x3c8] sm:$0xff]
    %v550 = vld [vmem:[#allocation2 + $0x3d0] sm:$0xff]
    %v551 = vld [vmem:[#allocation2 + $0x3d8] sm:$0xff]
    %v552 = vld [vmem:[#allocation2 + $0x3e0] sm:$0xff]
    %v553 = vld [vmem:[#allocation2 + $0x3e8] sm:$0xff]
    %v554 = vld [vmem:[#allocation2 + $0x3f0] sm:$0xff]
    %v555 = vld [vmem:[#allocation2 + $0x3f8] sm:$0xff]
    %556 = vmatprep.subr.mxu0 %v429
    %557 = vmatpush1.msra.mxu0 %v428
    %558 = vmatprep.subr.mxu0 %v431
    %559 = vmatpush1.msra.mxu0 %v430
    %560 = vmatprep.subr.mxu0 %v433
    %561 = vmatpush1.msra.mxu0 %v432
    %562 = vmatprep.subr.mxu0 %v435
    %563 = vmatpush1.msra.mxu0 %v434
    %564 = vmatprep.subr.mxu0 %v437
    %565 = vmatpush1.msra.mxu0 %v436
    %566 = vmatprep.subr.mxu0 %v439
    %567 = vmatpush1.msra.mxu0 %v438
    %568 = vmatprep.subr.mxu0 %v441
    %569 = vmatpush1.msra.mxu0 %v440
    %570 = vmatprep.subr.mxu0 %v443
    %571 = vmatpush1.msra.mxu0 %v442
    %572 = vmatprep.subr.mxu0 %v445
    %573 = vmatpush1.msra.mxu0 %v444
    %574 = vmatprep.subr.mxu0 %v447
    %575 = vmatpush1.msra.mxu0 %v446
    %576 = vmatprep.subr.mxu0 %v449
    %577 = vmatpush1.msra.mxu0 %v448
    %578 = vmatprep.subr.mxu0 %v451
    %579 = vmatpush1.msra.mxu0 %v450
    %580 = vmatprep.subr.mxu0 %v453
    %581 = vmatpush1.msra.mxu0 %v452
    %582 = vmatprep.subr.mxu0 %v455
    %583 = vmatpush1.msra.mxu0 %v454
    %584 = vmatprep.subr.mxu0 %v457
    %585 = vmatpush1.msra.mxu0 %v456
    %586 = vmatprep.subr.mxu0 %v459
    %587 = vmatpush1.msra.mxu0 %v458
    %588 = vmatprep.subr.mxu0 %v461
    %589 = vmatpush1.msra.mxu0 %v460
    %590 = vmatprep.subr.mxu0 %v463
    %591 = vmatpush1.msra.mxu0 %v462
    %592 = vmatprep.subr.mxu0 %v465
    %593 = vmatpush1.msra.mxu0 %v464
    %594 = vmatprep.subr.mxu0 %v467
    %595 = vmatpush1.msra.mxu0 %v466
    %596 = vmatprep.subr.mxu0 %v469
    %597 = vmatpush1.msra.mxu0 %v468
    %598 = vmatprep.subr.mxu0 %v471
    %599 = vmatpush1.msra.mxu0 %v470
    %600 = vmatprep.subr.mxu0 %v473
    %601 = vmatpush1.msra.mxu0 %v472
    %602 = vmatprep.subr.mxu0 %v475
    %603 = vmatpush1.msra.mxu0 %v474
    %604 = vmatprep.subr.mxu0 %v477
    %605 = vmatpush1.msra.mxu0 %v476
    %606 = vmatprep.subr.mxu0 %v479
    %607 = vmatpush1.msra.mxu0 %v478
    %608 = vmatprep.subr.mxu0 %v481
    %609 = vmatpush1.msra.mxu0 %v480
    %610 = vmatprep.subr.mxu0 %v483
    %611 = vmatpush1.msra.mxu0 %v482
    %612 = vmatprep.subr.mxu0 %v485
    %613 = vmatpush1.msra.mxu0 %v484
    %614 = vmatprep.subr.mxu0 %v487
    %615 = vmatpush1.msra.mxu0 %v486
    %616 = vmatprep.subr.mxu0 %v489
    %617 = vmatpush1.msra.mxu0 %v488
    %618 = vmatprep.subr.mxu0 %v491
    %619 = vmatpush1.msra.mxu0 %v490
    %620 = vmatprep.mubr.f32.mxu0 %v425
    %621 = vmatmul.mubr.f32.gmra.mrb[0].mxu0 %v424
    %v622 = vpop.f32.mrb[0].mxu0
    %v623 = vadd.f32 0.0, %v622
    %v624 = vpop.f32.mrb[0].mxu0
    %v625 = vadd.f32 0.0, %v624
    %626 = vdwg.mxu0
    %627 = vmatprep.subr.mxu0 %v493
    %628 = vmatpush1.msra.mxu0 %v492
    %629 = vmatprep.subr.mxu0 %v495
    %630 = vmatpush1.msra.mxu0 %v494
    %631 = vmatprep.subr.mxu0 %v497
    %632 = vmatpush1.msra.mxu0 %v496
    %633 = vmatprep.subr.mxu0 %v499
    %634 = vmatpush1.msra.mxu0 %v498
    %635 = vmatprep.subr.mxu0 %v501
    %636 = vmatpush1.msra.mxu0 %v500
    %637 = vmatprep.subr.mxu0 %v503
    %638 = vmatpush1.msra.mxu0 %v502
    %639 = vmatprep.subr.mxu0 %v505
    %640 = vmatpush1.msra.mxu0 %v504
    %641 = vmatprep.subr.mxu0 %v507
    %642 = vmatpush1.msra.mxu0 %v506
    %643 = vmatprep.subr.mxu0 %v509
    %644 = vmatpush1.msra.mxu0 %v508
    %645 = vmatprep.subr.mxu0 %v511
    %646 = vmatpush1.msra.mxu0 %v510
    %647 = vmatprep.subr.mxu0 %v513
    %648 = vmatpush1.msra.mxu0 %v512
    %649 = vmatprep.subr.mxu0 %v515
    %650 = vmatpush1.msra.mxu0 %v514
    %651 = vmatprep.subr.mxu0 %v517
    %652 = vmatpush1.msra.mxu0 %v516
    %653 = vmatprep.subr.mxu0 %v519
    %654 = vmatpush1.msra.mxu0 %v518
    %655 = vmatprep.subr.mxu0 %v521
    %656 = vmatpush1.msra.mxu0 %v520
    %657 = vmatprep.subr.mxu0 %v523
    %658 = vmatpush1.msra.mxu0 %v522
    %659 = vmatprep.subr.mxu0 %v525
    %660 = vmatpush1.msra.mxu0 %v524
    %661 = vmatprep.subr.mxu0 %v527
    %662 = vmatpush1.msra.mxu0 %v526
    %663 = vmatprep.subr.mxu0 %v529
    %664 = vmatpush1.msra.mxu0 %v528
    %665 = vmatprep.subr.mxu0 %v531
    %666 = vmatpush1.msra.mxu0 %v530
    %667 = vmatprep.subr.mxu0 %v533
    %668 = vmatpush1.msra.mxu0 %v532
    %669 = vmatprep.subr.mxu0 %v535
    %670 = vmatpush1.msra.mxu0 %v534
    %671 = vmatprep.subr.mxu0 %v537
    %672 = vmatpush1.msra.mxu0 %v536
    %673 = vmatprep.subr.mxu0 %v539
    %674 = vmatpush1.msra.mxu0 %v538
    %675 = vmatprep.subr.mxu0 %v541
    %676 = vmatpush1.msra.mxu0 %v540
    %677 = vmatprep.subr.mxu0 %v543
    %678 = vmatpush1.msra.mxu0 %v542
    %679 = vmatprep.subr.mxu0 %v545
    %680 = vmatpush1.msra.mxu0 %v544
    %681 = vmatprep.subr.mxu0 %v547
    %682 = vmatpush1.msra.mxu0 %v546
    %683 = vmatprep.subr.mxu0 %v549
    %684 = vmatpush1.msra.mxu0 %v548
    %685 = vmatprep.subr.mxu0 %v551
    %686 = vmatpush1.msra.mxu0 %v550
    %687 = vmatprep.subr.mxu0 %v553
    %688 = vmatpush1.msra.mxu0 %v552
    %689 = vmatprep.subr.mxu0 %v555
    %690 = vmatpush1.msra.mxu0 %v554
    %691 = vmatprep.mubr.f32.mxu0 %v427
    %692 = vmatmul.mubr.f32.gmra.mrb[0].mxu0 %v426
    %v693 = vpop.f32.mrb[0].mxu0
    %v694 = vadd.f32 %v623, %v693
    %v695 = vpop.f32.mrb[0].mxu0
    %v696 = vadd.f32 %v625, %v695
    %697 = vdwg.mxu0
    %v698 = vrot.slane %v694, 4
    %v699 = vadd.f32 %v694, %v698
    %v700 = vrot.slane %v699, 2
    %v701 = vadd.f32 %v699, %v700
    %v702 = vrot.slane %v701, 1
    %v703 = vadd.f32 %v701, %v702
    %v704 = vrot.slane %v696, 4
    %v705 = vadd.f32 %v696, %v704
    %v706 = vrot.slane %v705, 2
    %v707 = vadd.f32 %v705, %v706
    %v708 = vrot.slane %v707, 1
    %v709 = vadd.f32 %v707, %v708
    %v710 = vmul.f32 %v703, 0.125
    %v711 = vmul.f32 %v709, 0.125
    %v712 = vmul.f32 %v694, %v694
    %v713 = vmul.f32 %v696, %v696
    %v714 = vrot.slane %v712, 4
    %v715 = vadd.f32 %v712, %v714
    %v716 = vrot.slane %v715, 2
    %v717 = vadd.f32 %v715, %v716
    %v718 = vrot.slane %v717, 1
    %v719 = vadd.f32 %v717, %v718
    %v720 = vrot.slane %v713, 4
    %v721 = vadd.f32 %v713, %v720
    %v722 = vrot.slane %v721, 2
    %v723 = vadd.f32 %v721, %v722
    %v724 = vrot.slane %v723, 1
    %v725 = vadd.f32 %v723, %v724
    %v726 = vmul.f32 %v719, 0.125
    %v727 = vmul.f32 %v725, 0.125
    %v728 = vmul.f32 %v710, %v710
    %v729 = vmul.f32 %v711, %v711
    %v730 = vsub.f32 %v726, %v728
    %v731 = vsub.f32 %v727, %v729
    %s732 = scalar_lea.vmem [#allocation7], 2
    %v733 = vld [vmem:[%s732] ss:$8 sm:$0x3]
    %s734 = scalar_lea.vmem [#allocation7], 3
    %v735 = vld [vmem:[%s734] ss:$8 sm:$0x3]
    %v736 = vadd.f32 %v730, 1e-05
    %v737 = vadd.f32 %v731, 1e-05
    %v738 = vrsqrt.pop %v736
    %v739 = vrsqrt.pop %v737
    %v742 = vcombine.low %v738, %v739
    %v744 = vunpack.c.l.s4 1966171168
    %v745 = vunpack.c.0.s8 %v744
    %v746 = vlaneseq
    %v747 = vshrl.u32 %v746, 7
    %v748 = vsub.s32 %v745, %v747
    %v749 = vrot.slane %v742, %v748
    %v751 = vunpack.c.l.s4 1966171168
    %v752 = vunpack.c.0.s8 %v751
    %v753 = vlaneseq
    %v754 = vshrl.u32 %v753, 7
    %v755 = vsub.s32 %v752, %v754
    %v756 = vrot.slane %v749, %v755
    %v758 = vmul.f32 %v733, %v756
    %v760 = vlaneseq
    %v761 = vshrl.u32 %v760, 7
    %v762 = vsub.s32 0, %v761
    %v763 = vrot.slane %v758, %v762
    %v764 = vlaneseq
    %v765 = vshrl.u32 %v764, 7
    %v766 = vsub.s32 1, %v765
    %v767 = vrot.slane %v758, %v766
    %v770 = vmul.f32 %v710, %v763
    %v771 = vmul.f32 %v711, %v767
    %v774 = vcombine.low %v770, %v771
    %v776 = vunpack.c.l.s4 1966171168
    %v777 = vunpack.c.0.s8 %v776
    %v778 = vlaneseq
    %v779 = vshrl.u32 %v778, 7
    %v780 = vsub.s32 %v777, %v779
    %v781 = vrot.slane %v774, %v780
    %v783 = vunpack.c.l.s4 1966171168
    %v784 = vunpack.c.0.s8 %v783
    %v785 = vlaneseq
    %v786 = vshrl.u32 %v785, 7
    %v787 = vsub.s32 %v784, %v786
    %v788 = vrot.slane %v781, %v787
    %v790 = vsub.f32 %v735, %v788
    %v791 = vmul.f32 %v694, %v763
    %v792 = vmul.f32 %v696, %v767
    %v794 = vlaneseq
    %v795 = vshrl.u32 %v794, 7
    %v796 = vsub.s32 0, %v795
    %v797 = vrot.slane %v790, %v796
    %v798 = vlaneseq
    %v799 = vshrl.u32 %v798, 7
    %v800 = vsub.s32 1, %v799
    %v801 = vrot.slane %v790, %v800
    %v804 = vadd.f32 %v791, %v797
    %v805 = vadd.f32 %v792, %v801
    %v806 = vmax.f32 %v804, 0.0
    %v807 = vmax.f32 %v805, 0.0
    %v808 = vld [vmem:[#allocation5] sm:$0xff]
    %v809 = vld [vmem:[#allocation5 + $0x8] sm:$0xff]
    %v810 = vld [vmem:[#allocation5 + $0x10] sm:$0xff]
    %v811 = vld [vmem:[#allocation5 + $0x18] sm:$0xff]
    %v812 = vld [vmem:[#allocation5 + $0x20] sm:$0xff]
    %v813 = vld [vmem:[#allocation5 + $0x28] sm:$0xff]
    %v814 = vld [vmem:[#allocation5 + $0x30] sm:$0xff]
    %v815 = vld [vmem:[#allocation5 + $0x38] sm:$0xff]
    %v816 = vld [vmem:[#allocation5 + $0x40] sm:$0xff]
    %v817 = vld [vmem:[#allocation5 + $0x48] sm:$0xff]
    %v818 = vld [vmem:[#allocation5 + $0x50] sm:$0xff]
    %v819 = vld [vmem:[#allocation5 + $0x58] sm:$0xff]
    %v820 = vld [vmem:[#allocation5 + $0x60] sm:$0xff]
    %v821 = vld [vmem:[#allocation5 + $0x68] sm:$0xff]
    %v822 = vld [vmem:[#allocation5 + $0x70] sm:$0xff]
    %v823 = vld [vmem:[#allocation5 + $0x78] sm:$0xff]
    %v824 = vld [vmem:[#allocation5 + $0x80] sm:$0xff]
    %v825 = vld [vmem:[#allocation5 + $0x88] sm:$0xff]
    %v826 = vld [vmem:[#allocation5 + $0x90] sm:$0xff]
    %v827 = vld [vmem:[#allocation5 + $0x98] sm:$0xff]
    %v828 = vld [vmem:[#allocation5 + $0xa0] sm:$0xff]
    %v829 = vld [vmem:[#allocation5 + $0xa8] sm:$0xff]
    %v830 = vld [vmem:[#allocation5 + $0xb0] sm:$0xff]
    %v831 = vld [vmem:[#allocation5 + $0xb8] sm:$0xff]
    %v832 = vld [vmem:[#allocation5 + $0xc0] sm:$0xff]
    %v833 = vld [vmem:[#allocation5 + $0xc8] sm:$0xff]
    %v834 = vld [vmem:[#allocation5 + $0xd0] sm:$0xff]
    %v835 = vld [vmem:[#allocation5 + $0xd8] sm:$0xff]
    %v836 = vld [vmem:[#allocation5 + $0xe0] sm:$0xff]
    %v837 = vld [vmem:[#allocation5 + $0xe8] sm:$0xff]
    %v838 = vld [vmem:[#allocation5 + $0xf0] sm:$0xff]
    %v839 = vld [vmem:[#allocation5 + $0xf8] sm:$0xff]
    %840 = vmatprep.subr.mxu0 0.0
    %841 = vmatpush1.msra.mxu0 %v808
    %842 = vmatprep.subr.mxu0 0.0
    %843 = vmatpush1.msra.mxu0 %v809
    %844 = vmatprep.subr.mxu0 0.0
    %845 = vmatpush1.msra.mxu0 %v810
    %846 = vmatprep.subr.mxu0 0.0
    %847 = vmatpush1.msra.mxu0 %v811
    %848 = vmatprep.subr.mxu0 0.0
    %849 = vmatpush1.msra.mxu0 %v812
    %850 = vmatprep.subr.mxu0 0.0
    %851 = vmatpush1.msra.mxu0 %v813
    %852 = vmatprep.subr.mxu0 0.0
    %853 = vmatpush1.msra.mxu0 %v814
    %854 = vmatprep.subr.mxu0 0.0
    %855 = vmatpush1.msra.mxu0 %v815
    %856 = vmatprep.subr.mxu0 0.0
    %857 = vmatpush1.msra.mxu0 %v816
    %858 = vmatprep.subr.mxu0 0.0
    %859 = vmatpush1.msra.mxu0 %v817
    %860 = vmatprep.subr.mxu0 0.0
    %861 = vmatpush1.msra.mxu0 %v818
    %862 = vmatprep.subr.mxu0 0.0
    %863 = vmatpush1.msra.mxu0 %v819
    %864 = vmatprep.subr.mxu0 0.0
    %865 = vmatpush1.msra.mxu0 %v820
    %866 = vmatprep.subr.mxu0 0.0
    %867 = vmatpush1.msra.mxu0 %v821
    %868 = vmatprep.subr.mxu0 0.0
    %869 = vmatpush1.msra.mxu0 %v822
    %870 = vmatprep.subr.mxu0 0.0
    %871 = vmatpush1.msra.mxu0 %v823
    %872 = vmatprep.subr.mxu0 0.0
    %873 = vmatpush1.msra.mxu0 %v824
    %874 = vmatprep.subr.mxu0 0.0
    %875 = vmatpush1.msra.mxu0 %v825
    %876 = vmatprep.subr.mxu0 0.0
    %877 = vmatpush1.msra.mxu0 %v826
    %878 = vmatprep.subr.mxu0 0.0
    %879 = vmatpush1.msra.mxu0 %v827
    %880 = vmatprep.subr.mxu0 0.0
    %881 = vmatpush1.msra.mxu0 %v828
    %882 = vmatprep.subr.mxu0 0.0
    %883 = vmatpush1.msra.mxu0 %v829
    %884 = vmatprep.subr.mxu0 0.0
    %885 = vmatpush1.msra.mxu0 %v830
    %886 = vmatprep.subr.mxu0 0.0
    %887 = vmatpush1.msra.mxu0 %v831
    %888 = vmatprep.subr.mxu0 0.0
    %889 = vmatpush1.msra.mxu0 %v832
    %890 = vmatprep.subr.mxu0 0.0
    %891 = vmatpush1.msra.mxu0 %v833
    %892 = vmatprep.subr.mxu0 0.0
    %893 = vmatpush1.msra.mxu0 %v834
    %894 = vmatprep.subr.mxu0 0.0
    %895 = vmatpush1.msra.mxu0 %v835
    %896 = vmatprep.subr.mxu0 0.0
    %897 = vmatpush1.msra.mxu0 %v836
    %898 = vmatprep.subr.mxu0 0.0
    %899 = vmatpush1.msra.mxu0 %v837
    %900 = vmatprep.subr.mxu0 0.0
    %901 = vmatpush1.msra.mxu0 %v838
    %902 = vmatprep.subr.mxu0 0.0
    %903 = vmatpush1.msra.mxu0 %v839
    %904 = vmatprep.mubr.f32.mxu0 %v807
    %905 = vmatmul.mubr.f32.gmra.mrb[0].mxu0 %v806
    %v906 = vpop.f32.mrb[0].mxu0
    %v907 = vadd.f32 0.0, %v906
    %v908 = vpop.f32.mrb[0].mxu0
    %909 = vdwg.mxu0
    %v910 = vrot.slane %v907, 4
    %v911 = vadd.f32 %v907, %v910
    %v912 = vrot.slane %v911, 2
    %v913 = vadd.f32 %v911, %v912
    %v914 = vrot.slane %v913, 1
    %v915 = vadd.f32 %v913, %v914
    %v916 = vmul.f32 %v915, 0.125
    %v917 = vmul.f32 %v907, %v907
    %v918 = vrot.slane %v917, 4
    %v919 = vadd.f32 %v917, %v918
    %v920 = vrot.slane %v919, 2
    %v921 = vadd.f32 %v919, %v920
    %v922 = vrot.slane %v921, 1
    %v923 = vadd.f32 %v921, %v922
    %v924 = vmul.f32 %v923, 0.125
    %v925 = vmul.f32 %v916, %v916
    %v926 = vsub.f32 %v924, %v925
    %v927 = vld [vmem:[#allocation7 + $0x4] ss:$0 sm:$0xff]
    %v928 = vld [vmem:[#allocation7 + $0x5] ss:$0 sm:$0xff]
    %v929 = vadd.f32 %v926, 1e-05
    %v930 = vrsqrt.pop %v929
    %v931 = vmul.f32 %v927, %v930
    %v932 = vmul.f32 %v916, %v931
    %v933 = vsub.f32 %v928, %v932
    %v934 = vmul.f32 %v907, %v931
    %v935 = vadd.f32 %v934, %v933
    %v936 = vmax.f32 %v935, 0.0
    %v937 = vld [vmem:[%s4] sm:$0xff]
    %v938 = vld [vmem:[%s4 + $0x8] sm:$0xff]
    %v939 = vld [vmem:[%s4 + $0x10] sm:$0xff]
    %v940 = vld [vmem:[%s4 + $0x18] sm:$0xff]
    %v941 = vld [vmem:[%s4 + $0x20] sm:$0xff]
    %v942 = vld [vmem:[%s4 + $0x28] sm:$0xff]
    %v943 = vld [vmem:[%s4 + $0x30] sm:$0xff]
    %v944 = vld [vmem:[%s4 + $0x38] sm:$0xff]
    %v945 = vld [vmem:[%s4 + $0x40] sm:$0xff]
    %v946 = vld [vmem:[%s4 + $0x48] sm:$0xff]
    %v947 = vld [vmem:[%s4 + $0x50] sm:$0xff]
    %v948 = vld [vmem:[%s4 + $0x58] sm:$0xff]
    %v949 = vld [vmem:[%s4 + $0x60] sm:$0xff]
    %v950 = vld [vmem:[%s4 + $0x68] sm:$0xff]
    %v951 = vld [vmem:[%s4 + $0x70] sm:$0xff]
    %v952 = vld [vmem:[%s4 + $0x78] sm:$0xff]
    %953 = vmatprep.subr.mxu0 0.0
    %954 = vmatpush1.msra.mxu0 %v937
    %955 = vmatprep.subr.mxu0 0.0
    %956 = vmatpush1.msra.mxu0 %v938
    %957 = vmatprep.subr.mxu0 0.0
    %958 = vmatpush1.msra.mxu0 %v939
    %959 = vmatprep.subr.mxu0 0.0
    %960 = vmatpush1.msra.mxu0 %v940
    %961 = vmatprep.subr.mxu0 0.0
    %962 = vmatpush1.msra.mxu0 %v941
    %963 = vmatprep.subr.mxu0 0.0
    %964 = vmatpush1.msra.mxu0 %v942
    %965 = vmatprep.subr.mxu0 0.0
    %966 = vmatpush1.msra.mxu0 %v943
    %967 = vmatprep.subr.mxu0 0.0
    %968 = vmatpush1.msra.mxu0 %v944
    %969 = vmatprep.subr.mxu0 0.0
    %970 = vmatpush1.msra.mxu0 %v945
    %971 = vmatprep.subr.mxu0 0.0
    %972 = vmatpush1.msra.mxu0 %v946
    %973 = vmatprep.subr.mxu0 0.0
    %974 = vmatpush1.msra.mxu0 %v947
    %975 = vmatprep.subr.mxu0 0.0
    %976 = vmatpush1.msra.mxu0 %v948
    %977 = vmatprep.subr.mxu0 0.0
    %978 = vmatpush1.msra.mxu0 %v949
    %979 = vmatprep.subr.mxu0 0.0
    %980 = vmatpush1.msra.mxu0 %v950
    %981 = vmatprep.subr.mxu0 0.0
    %982 = vmatpush1.msra.mxu0 %v951
    %983 = vmatprep.subr.mxu0 0.0
    %984 = vmatpush1.msra.mxu0 %v952
    %985 = vmatprep.subr.mxu0 0.0
    %986 = vmatpush1.msra.mxu0 0.0
    %987 = vmatprep.subr.mxu0 0.0
    %988 = vmatpush1.msra.mxu0 0.0
    %989 = vmatprep.subr.mxu0 0.0
    %990 = vmatpush1.msra.mxu0 0.0
    %991 = vmatprep.subr.mxu0 0.0
    %992 = vmatpush1.msra.mxu0 0.0
    %993 = vmatprep.subr.mxu0 0.0
    %994 = vmatpush1.msra.mxu0 0.0
    %995 = vmatprep.subr.mxu0 0.0
    %996 = vmatpush1.msra.mxu0 0.0
    %997 = vmatprep.subr.mxu0 0.0
    %998 = vmatpush1.msra.mxu0 0.0
    %999 = vmatprep.subr.mxu0 0.0
    %1000 = vmatpush1.msra.mxu0 0.0
    %1001 = vmatprep.subr.mxu0 0.0
    %1002 = vmatpush1.msra.mxu0 0.0
    %1003 = vmatprep.subr.mxu0 0.0
    %1004 = vmatpush1.msra.mxu0 0.0
    %1005 = vmatprep.subr.mxu0 0.0
    %1006 = vmatpush1.msra.mxu0 0.0
    %1007 = vmatprep.subr.mxu0 0.0
    %1008 = vmatpush1.msra.mxu0 0.0
    %1009 = vmatprep.subr.mxu0 0.0
    %1010 = vmatpush1.msra.mxu0 0.0
    %1011 = vmatprep.subr.mxu0 0.0
    %1012 = vmatpush1.msra.mxu0 0.0
    %1013 = vmatprep.subr.mxu0 0.0
    %1014 = vmatpush1.msra.mxu0 0.0
    %1015 = vmatprep.subr.mxu0 0.0
    %1016 = vmatpush1.msra.mxu0 0.0
    %1017 = vmatprep.mubr.f32.mxu0 0.0
    %1018 = vmatmul.mubr.f32.gmra.mrb[0].mxu0 %v936
    %v1019 = vpop.f32.mrb[0].mxu0
    %v1020 = vadd.f32 0.0, %v1019
    %v1021 = vpop.f32.mrb[0].mxu0
    %1022 = vdwg.mxu0
    %vm1023 = vcmask 523264
    %v1024 = vsel %vm1023, %v1020, 0.0
    %v1025 = vrot.slane %v1024, 4
    %v1026 = vadd.f32 %v1024, %v1025
    %v1027 = vrot.slane %v1026, 2
    %v1028 = vadd.f32 %v1026, %v1027
    %v1029 = vrot.slane %v1028, 1
    %v1030 = vadd.f32 %v1028, %v1029
    %v1031 = vmul.f32 %v1030, 0.125
    %v1032 = vmul.f32 %v1020, %v1020
    %v1033 = vsel %vm1023, %v1032, 0.0
    %v1034 = vrot.slane %v1033, 4
    %v1035 = vadd.f32 %v1033, %v1034
    %v1036 = vrot.slane %v1035, 2
    %v1037 = vadd.f32 %v1035, %v1036
    %v1038 = vrot.slane %v1037, 1
    %v1039 = vadd.f32 %v1037, %v1038
    %v1040 = vmul.f32 %v1039, 0.125
    %v1041 = vmul.f32 %v1031, %v1031
    %v1042 = vsub.f32 %v1040, %v1041
    %v1043 = vld [vmem:[#allocation7 + $0x6] ss:$0 sm:$0xff]
    %v1044 = vld [vmem:[#allocation7 + $0x7] ss:$0 sm:$0xff]
    %v1045 = vadd.f32 %v1042, 1e-05
    %v1046 = vrsqrt.pop %v1045
    %v1047 = vmul.f32 %v1043, %v1046
    %v1048 = vmul.f32 %v1031, %v1047
    %v1049 = vsub.f32 %v1044, %v1048
    %v1050 = vmul.f32 %v1020, %v1047
    %v1051 = vadd.f32 %v1050, %v1049
    %v1052 = vmax.f32 %v1051, 0.0
    %v1053 = vld [vmem:[%s5] sm:$0xff]
    %v1054 = vld [vmem:[%s5 + $0x8] sm:$0xff]
    %v1055 = vld [vmem:[%s5 + $0x10] sm:$0xff]
    %v1056 = vld [vmem:[%s5 + $0x18] sm:$0xff]
    %v1057 = vld [vmem:[%s5 + $0x20] sm:$0xff]
    %v1058 = vld [vmem:[%s5 + $0x28] sm:$0xff]
    %v1059 = vld [vmem:[%s5 + $0x30] sm:$0xff]
    %v1060 = vld [vmem:[%s5 + $0x38] sm:$0xff]
    %v1061 = vld [vmem:[#allocation7 + $0x20] ss:$0 sm:$0xff]
    %v1063 = vsel %vm1023, %v1052, 0
    %1065 = vmatprep.subr.mxu0 0.0
    %1066 = vmatpush1.msra.mxu0 %v1053
    %1067 = vmatprep.subr.mxu0 0.0
    %1068 = vmatpush1.msra.mxu0 %v1054
    %1069 = vmatprep.subr.mxu0 0.0
    %1070 = vmatpush1.msra.mxu0 %v1055
    %1071 = vmatprep.subr.mxu0 0.0
    %1072 = vmatpush1.msra.mxu0 %v1056
    %1073 = vmatprep.subr.mxu0 0.0
    %1074 = vmatpush1.msra.mxu0 %v1057
    %1075 = vmatprep.subr.mxu0 0.0
    %1076 = vmatpush1.msra.mxu0 %v1058
    %1077 = vmatprep.subr.mxu0 0.0
    %1078 = vmatpush1.msra.mxu0 %v1059
    %1079 = vmatprep.subr.mxu0 0.0
    %1080 = vmatpush1.msra.mxu0 %v1060
    %1081 = vmatprep.subr.mxu0 0.0
    %1082 = vmatpush1.msra.mxu0 0.0
    %1083 = vmatprep.subr.mxu0 0.0
    %1084 = vmatpush1.msra.mxu0 0.0
    %1085 = vmatprep.subr.mxu0 0.0
    %1086 = vmatpush1.msra.mxu0 0.0
    %1087 = vmatprep.subr.mxu0 0.0
    %1088 = vmatpush1.msra.mxu0 0.0
    %1089 = vmatprep.subr.mxu0 0.0
    %1090 = vmatpush1.msra.mxu0 0.0
    %1091 = vmatprep.subr.mxu0 0.0
    %1092 = vmatpush1.msra.mxu0 0.0
    %1093 = vmatprep.subr.mxu0 0.0
    %1094 = vmatpush1.msra.mxu0 0.0
    %1095 = vmatprep.subr.mxu0 0.0
    %1096 = vmatpush1.msra.mxu0 0.0
    %1097 = vmatprep.subr.mxu0 0.0
    %1098 = vmatpush1.msra.mxu0 0.0
    %1099 = vmatprep.subr.mxu0 0.0
    %1100 = vmatpush1.msra.mxu0 0.0
    %1101 = vmatprep.subr.mxu0 0.0
    %1102 = vmatpush1.msra.mxu0 0.0
    %1103 = vmatprep.subr.mxu0 0.0
    %1104 = vmatpush1.msra.mxu0 0.0
    %1105 = vmatprep.subr.mxu0 0.0
    %1106 = vmatpush1.msra.mxu0 0.0
    %1107 = vmatprep.subr.mxu0 0.0
    %1108 = vmatpush1.msra.mxu0 0.0
    %1109 = vmatprep.subr.mxu0 0.0
    %1110 = vmatpush1.msra.mxu0 0.0
    %1111 = vmatprep.subr.mxu0 0.0
    %1112 = vmatpush1.msra.mxu0 0.0
    %1113 = vmatprep.subr.mxu0 0.0
    %1114 = vmatpush1.msra.mxu0 0.0
    %1115 = vmatprep.subr.mxu0 0.0
    %1116 = vmatpush1.msra.mxu0 0.0
    %1117 = vmatprep.subr.mxu0 0.0
    %1118 = vmatpush1.msra.mxu0 0.0
    %1119 = vmatprep.subr.mxu0 0.0
    %1120 = vmatpush1.msra.mxu0 0.0
    %1121 = vmatprep.subr.mxu0 0.0
    %1122 = vmatpush1.msra.mxu0 0.0
    %1123 = vmatprep.subr.mxu0 0.0
    %1124 = vmatpush1.msra.mxu0 0.0
    %1125 = vmatprep.subr.mxu0 0.0
    %1126 = vmatpush1.msra.mxu0 0.0
    %1127 = vmatprep.subr.mxu0 0.0
    %1128 = vmatpush1.msra.mxu0 0.0
    %1129 = vmatprep.mubr.f32.mxu0 0.0
    %1130 = vmatmul.mubr.f32.gmra.mrb[0].mxu0 %v1063
    %v1131 = vpop.f32.mrb[0].mxu0
    %v1132 = vadd.f32 %v1061, %v1131
    %v1133 = vpop.f32.mrb[0].mxu0
    %1134 = vdwg.mxu0
    %v1135 = vtanh.pop %v1132
    %1136 = vst [vmem:[#allocation8] sm:$0xff] %v1135
    // Predicated region
    $region42: #{generator_forward.1} parent=1 // pred_check
      _
    $region43: #{generator_forward.1} parent=1 // pred_check_branch
      %1138 = sbr.rel (0) target = $region45
    $region44: #{generator_forward.1} parent=1 // pred_region
      %s1140 = ssub.s32 128, 128
      %1141 = vsyncadd [#allocation4], %s1140
      %s1143 = sshll.u32 [#allocation8], 4
      %s1144 = int_to_ptr.vmem [resolvable:$true] %s1143
      %1146 = dma.vmem_to_hbm [thread:$0]  %s1144, 128, %s7, [#allocation4]
    $region45: #{generator_forward.1} parent=1 // pred_fallthru
      _
    // Predicated region
    $region46: #{generator_forward.1} parent=1 // pred_check
      _
    $region47: #{generator_forward.1} parent=1 // pred_check_branch
      %1148 = sbr.rel (0) target = $region49
    $region48: #{generator_forward.1} parent=1 // pred_region
      %1149 = dma.done [#allocation4], 128
    $region49: #{generator_forward.1} parent=1 // pred_fallthru
      _
    %1150 = vsyncpa [#allocation3], 1
    %1151 = vsyncpa [#allocation6], 1
    %1152 = vsyncpa [#allocation4], 1

</llo_original>
